<compile_context>
chip_gen: v7x
topology: tpu7x:2x2x1
jax: 0.10.0
libtpu: 0.0.40
codegen_flags: <defaults>
</compile_context>

<pallas_src>
import functools

import jax
import jax.numpy as jnp
from jax import lax
from jax.experimental import pallas as pl
from jax.experimental.pallas import tpu as pltpu

INITIAL_TEMPERATURE = 0.07
MIN_TEMPERATURE = 0.01
TOTAL_EPOCHS = 300
ALPHA = 0.5  # constructor default weight between NT-Xent and BCE


def _pick_row_tile(b):
    if b % 8 != 0:
        raise ValueError(f"batch size must be a multiple of 8 (got {b})")
    # Prefer (a) >= 2 grid steps so the "parallel" axis can feed both v7x
    # TensorCores and (b) multiples of 16 so bf16 label blocks are layout
    # friendly.  Tiny batches fall back to one full-batch tile.
    for cand in (256, 128, 64, 32, 16):
        if b % cand == 0 and b // cand >= 2:
            return cand
    return b


def _l2_normalize(x):
    # F.normalize(dim=-1): x / max(||x||, 1e-12)  ==  x * rsqrt(max(||x||^2, 1e-24))
    ss = jnp.sum(x * x, axis=-1, keepdims=True)
    return x * lax.rsqrt(jnp.maximum(ss, 1e-24))


def _loss_kernel(inv_t2_ref, s_norm_ref, t_norm_ref, s_raw_ref, y_ref, out_ref,
                 *, tq, b, d_true, use_bf16_matmul):
    q = pl.program_id(0)
    i0 = pl.multiple_of(q * tq, tq)
    inv_t2 = inv_t2_ref[0, 0]

    # Pre-normalized keys (resident; normalization was hoisted to the wrapper).
    s_keys = s_norm_ref[...]                    # (B, Dp)
    t_keys = t_norm_ref[...]                    # (B, Dp)
    # Query tiles are row slices of the resident keys.
    s_q = s_norm_ref[pl.ds(i0, tq), :]          # (TQ, Dp)
    t_q = t_norm_ref[pl.ds(i0, tq), :]          # (TQ, Dp)

    if use_bf16_matmul:
        s_q_m, t_q_m = s_q.astype(jnp.bfloat16), t_q.astype(jnp.bfloat16)
        s_k_m, t_k_m = s_keys.astype(jnp.bfloat16), t_keys.astype(jnp.bfloat16)
        tgt_a, tgt_b = s_q_m.astype(jnp.float32), t_q_m.astype(jnp.float32)
    else:
        s_q_m, t_q_m, s_k_m, t_k_m = s_q, t_q, s_keys, t_keys
        tgt_a, tgt_b = s_q, t_q

    # Analytic target logit of pair i: dot(s_n[i], t_n[i]) / temp^2 — computed
    # from the same (possibly bf16-rounded) operands as the matmuls so the
    # per-row CE stays consistent with the LSE.
    tgt = jnp.sum(tgt_a * tgt_b, axis=-1, keepdims=True) * inv_t2   # (TQ, 1)

    # Two MXU matmuls instead of four: stack the query tiles so each RHS is
    # pushed into the MXU only once.  Contract the last (lane) dims directly —
    # no physical transpose.
    q2 = jnp.concatenate([s_q_m, t_q_m], axis=0)                    # (2TQ, Dp)
    dn = (((1,), (1,)), ((), ()))
    sim_s = lax.dot_general(q2, s_k_m, dn, preferred_element_type=jnp.float32)  # (2TQ, B)
    sim_t = lax.dot_general(q2, t_k_m, dn, preferred_element_type=jnp.float32)  # (2TQ, B)

    # Reference zeroes the diagonal logits (not -inf) and divides by the
    # temperature twice -> one fused inv_t2 multiply.  Diagonals exist only in
    # the student-vs-student block (rows < TQ of sim_s) and the
    # teacher-vs-teacher block (rows >= TQ of sim_t).
    rows = lax.broadcasted_iota(jnp.int32, (2 * tq, b), 0)
    cols = lax.broadcasted_iota(jnp.int32, (2 * tq, b), 1)
    diag_s = jnp.logical_and(rows < tq, cols == rows + i0)
    diag_t = jnp.logical_and(rows >= tq, cols == rows - tq + i0)
    l_s = jnp.where(diag_s, 0.0, sim_s * inv_t2)
    l_t = jnp.where(diag_t, 0.0, sim_t * inv_t2)

    # Row-wise logsumexp over all 2B columns (the two key halves).
    m = jnp.maximum(jnp.max(l_s, axis=-1, keepdims=True),
                    jnp.max(l_t, axis=-1, keepdims=True))
    lse = m + jnp.log(jnp.sum(jnp.exp(l_s - m), axis=-1, keepdims=True)
                      + jnp.sum(jnp.exp(l_t - m), axis=-1, keepdims=True))  # (2TQ, 1)

    # Pair i contributes CE(student row i) + CE(teacher row B+i).
    ntx_pair = (lse[:tq] - tgt) + (lse[tq:] - tgt)                  # (TQ, 1)

    # BCEWithLogits on the raw student tile, masked to the true feature dim.
    x = s_raw_ref[...]                                              # (TQ, Dp) f32
    y = y_ref[...].astype(jnp.float32)
    ax = jnp.abs(x)
    e = jnp.exp(-ax)
    # log1p-accurate softplus using only log/exp/where (no log1p lowering risk).
    softplus = jnp.where(ax > 20.0, e, jnp.log(1.0 + e))
    elem = jnp.maximum(x, 0.0) - x * y + softplus
    lane = lax.broadcasted_iota(jnp.int32, x.shape, 1)
    elem = jnp.where(lane < d_true, elem, 0.0)
    bce_row = jnp.sum(elem, axis=-1, keepdims=True)                  # (TQ, 1)

    # Lane-dense packed output (single unmasked (TQ,128) store):
    #   col 0 = NT-Xent partial, col 1 = BCE partial, rest zero.
    out_lane = lax.broadcasted_iota(jnp.int32, (tq, 128), 1)
    out_ref[...] = jnp.where(out_lane == 0, ntx_pair,
                             jnp.where(out_lane == 1, bce_row, 0.0))


def distillation_loss(student_logits, teacher_logits, true_labels, epoch, *,
                      alpha=ALPHA, use_bf16_matmul=False, tq=None):
    """Forward pass of DistillationWithContrastiveNTXentAndTemperatureAnnealing.

    student_logits, teacher_logits, true_labels: (B, D); epoch: scalar.
    Returns the scalar total loss.
    """
    s = student_logits.astype(jnp.float32)
    t = teacher_logits.astype(jnp.float32)
    y = true_labels.astype(jnp.float32)
    B, D = s.shape
    if B % 8 != 0:
        # TODO(synk): row padding would additionally need softmax-row masking.
        raise ValueError("batch size must be a multiple of 8")

    # Hoisted key normalization: one cheap (B, D) XLA pass instead of
    # O(B^2 * D / TQ) re-normalization inside the kernel.
    s_n = _l2_normalize(s)
    t_n = _l2_normalize(t)

    # Lane density: pad the feature dim to a multiple of 128.  Zero padding
    # changes neither norms nor dot products; BCE masks padded lanes in-kernel.
    Dp = ((D + 127) // 128) * 128
    if Dp != D:
        pad = ((0, 0), (0, Dp - D))
        s_n, t_n = jnp.pad(s_n, pad), jnp.pad(t_n, pad)
        s_raw, y_p = jnp.pad(s, pad), jnp.pad(y, pad)
    else:
        s_raw, y_p = s, y
    # Labels are the only per-step streamed input besides the raw student rows;
    # stream them as bf16 (exact for 0/1 labels) to halve their DMA bytes.
    y_p = y_p.astype(jnp.bfloat16)

    TQ = tq if tq is not None else _pick_row_tile(B)
    if B % TQ != 0:
        raise ValueError("tq must divide the batch size")
    G = B // TQ

    # Single-call temperature annealing (fresh module):
    #   temp = temp0 - (temp0 - min_temp) * (epoch / total_epochs)
    temp = (jnp.float32(INITIAL_TEMPERATURE)
            - (INITIAL_TEMPERATURE - MIN_TEMPERATURE)
            * (jnp.float32(epoch) / jnp.float32(TOTAL_EPOCHS)))
    inv_t2 = (1.0 / (temp * temp)).reshape(1, 1).astype(jnp.float32)

    kernel = functools.partial(_loss_kernel, tq=TQ, b=B, d_true=D,
                               use_bf16_matmul=use_bf16_matmul)

    # Generation-aware VMEM budget (v7x: 64 MiB physical, v5e/v6e: 128 MiB),
    # leaving ~15% headroom for compiler scratch / pipeline buffers.
    try:
        phys_vmem = int(pltpu.get_tpu_info().vmem_capacity_bytes)
    except Exception:
        phys_vmem = 64 * 1024 * 1024
    vmem_cap = int(phys_vmem * 0.85)

    def run(single_buffer_keys):
        key_bufs = 1 if single_buffer_keys else 2
        key_kwargs = ({"pipeline_mode": pl.Buffered(1)}
                      if single_buffer_keys else {})
        need = (key_bufs * 2 * B * Dp * 4          # resident normalized keys
                + 2 * TQ * Dp * (4 + 2)            # raw student (f32) + labels (bf16), dbl-buf
                + 2 * TQ * 128 * 4                 # packed output, dbl-buf
                + 6 * 2 * TQ * B * 4               # sim blocks + mask/exp temporaries
                + 4 * TQ * Dp * 4                  # stacked query tile + casts
                + (2 << 20))
        vmem_limit = int(min(max(need, 32 * 1024 * 1024), vmem_cap))
        return pl.pallas_call(
            kernel,
            out_shape=jax.ShapeDtypeStruct((B, 128), jnp.float32),
            grid=(G,),
            in_specs=[
                pl.BlockSpec(memory_space=pltpu.MemorySpace.SMEM),      # 1/temp^2 scalar
                pl.BlockSpec((B, Dp), lambda q: (0, 0), **key_kwargs),  # normalized student keys
                pl.BlockSpec((B, Dp), lambda q: (0, 0), **key_kwargs),  # normalized teacher keys
                pl.BlockSpec((TQ, Dp), lambda q: (q, 0)),               # raw student rows (BCE)
                pl.BlockSpec((TQ, Dp), lambda q: (q, 0)),               # labels (bf16)
            ],
            out_specs=pl.BlockSpec((TQ, 128), lambda q: (q, 0)),
            compiler_params=pltpu.CompilerParams(
                dimension_semantics=("parallel",),
                vmem_limit_bytes=vmem_limit),
        )(inv_t2, s_n, t_n, s_raw, y_p)

    try:
        packed = run(single_buffer_keys=True)
    except Exception:
        # Fallback if this JAX build rejects Buffered(1) single-buffering on the
        # grid-invariant key blocks.
        packed = run(single_buffer_keys=False)

    ntxent = jnp.sum(packed[:, 0]) / (2.0 * B)   # mean CE over the 2B softmax rows
    bce = jnp.sum(packed[:, 1]) / (B * D)        # mean over all (unpadded) elements
    return alpha * ntxent + (1.0 - alpha) * bce


def _reference_loss(student, teacher, labels, epoch, alpha=ALPHA):
    """Pure-JAX mirror of the PyTorch forward, for sanity checking."""
    temp = INITIAL_TEMPERATURE - (INITIAL_TEMPERATURE - MIN_TEMPERATURE) * (epoch / TOTAL_EPOCHS)

    def norm(x):
        return x / jnp.maximum(jnp.linalg.norm(x, axis=-1, keepdims=True), 1e-12)

    feats = jnp.concatenate([norm(student), norm(teacher)], axis=0)
    sim = jnp.dot(feats, feats.T, precision="highest") / temp
    n = feats.shape[0]
    b = student.shape[0]
    mask = 1.0 - jnp.eye(n, dtype=jnp.float32)
    logits = sim * mask / temp
    lbls = jnp.concatenate([jnp.arange(b) + b, jnp.arange(b)])
    logp = jax.nn.log_softmax(logits, axis=-1)
    ntxent = -jnp.mean(logp[jnp.arange(n), lbls])

    x, y = student, labels
    bce = jnp.mean(jnp.maximum(x, 0.0) - x * y + jnp.log1p(jnp.exp(-jnp.abs(x))))
    return alpha * ntxent + (1.0 - alpha) * bce


if __name__ == "__main__":
    key = jax.random.PRNGKey(0)
    k1, k2, k3 = jax.random.split(key, 3)
    B, D = 8, 32
    epoch = 10
    student = jax.random.normal(k1, (B, D), dtype=jnp.float32)
    teacher = jax.random.normal(k2, (B, D), dtype=jnp.float32)
    true_labels = jax.random.bernoulli(k3, 0.5, (B, D)).astype(jnp.float32)

    loss = distillation_loss(student, teacher, true_labels, epoch)
    jax.block_until_ready(loss)

    ref = _reference_loss(student, teacher, true_labels, epoch)
    assert jnp.allclose(loss, ref, rtol=1e-3, atol=1e-3), (loss, ref)

    print("KERNEL_OK")
</pallas_src>

<mosaic_0001>
module attributes {stable_mosaic.version = 11 : i64} {
  func.func @_loss_kernel(%arg0: i32, %arg1: memref<1x1xf32, #tpu.memory_space<smem>>, %arg2: memref<8x128xf32, #tpu.memory_space<vmem>>, %arg3: memref<8x128xf32, #tpu.memory_space<vmem>>, %arg4: memref<8x128xf32, #tpu.memory_space<vmem>>, %arg5: memref<8x128xbf16, #tpu.memory_space<vmem>>, %arg6: memref<8x128xf32, #tpu.memory_space<vmem>>) attributes {dimension_semantics = [#tpu.dimension_semantics<parallel>], iteration_bounds = array<i64: 1>, scalar_prefetch = 0 : i64, scratch_operands = 0 : i64, tpu.core_type = #tpu.core_type<tc>, window_params = [{transform_indices = @transform_0, window_bounds = array<i64: 1, 1>}, {pipeline_mode = #tpu.pipeline_mode<synchronous>, transform_indices = @transform_1, window_bounds = array<i64: 8, 128>}, {pipeline_mode = #tpu.pipeline_mode<synchronous>, transform_indices = @transform_2, window_bounds = array<i64: 8, 128>}, {transform_indices = @transform_3, window_bounds = array<i64: 8, 128>}, {transform_indices = @transform_4, window_bounds = array<i64: 8, 128>}, {transform_indices = @transform_5, window_bounds = array<i64: 8, 128>}]} {
    %c8_i32 = arith.constant 8 : i32
    %0 = arith.muli %arg0, %c8_i32 : i32
    %1 = tpu.assume_multiple %0, 8 : i32
    %c0 = arith.constant 0 : index
    %c0_0 = arith.constant 0 : index
    %2 = memref.load %arg1[%c0, %c0_0] : memref<1x1xf32, #tpu.memory_space<smem>>
    %c0_1 = arith.constant 0 : index
    %c0_2 = arith.constant 0 : index
    %3 = vector.load %arg2[%c0_1, %c0_2] : memref<8x128xf32, #tpu.memory_space<vmem>>, vector<8x128xf32>
    %c0_3 = arith.constant 0 : index
    %c0_4 = arith.constant 0 : index
    %4 = vector.load %arg3[%c0_3, %c0_4] : memref<8x128xf32, #tpu.memory_space<vmem>>, vector<8x128xf32>
    %5 = arith.index_cast %1 : i32 to index
    %c0_5 = arith.constant 0 : index
    %6 = vector.load %arg2[%5, %c0_5] : memref<8x128xf32, #tpu.memory_space<vmem>>, vector<8x128xf32>
    %7 = arith.index_cast %1 : i32 to index
    %c0_6 = arith.constant 0 : index
    %8 = vector.load %arg3[%7, %c0_6] : memref<8x128xf32, #tpu.memory_space<vmem>>, vector<8x128xf32>
    %9 = arith.mulf %6, %8 : vector<8x128xf32>
    %cst = arith.constant dense<0.000000e+00> : vector<8xf32>
    %10 = vector.multi_reduction <add>, %9, %cst [1] : vector<8x128xf32> to vector<8xf32>
    %11 = vector.shape_cast %10 : vector<8xf32> to vector<8x1xf32>
    %12 = vector.broadcast %2 : f32 to vector<8x1xf32>
    %13 = arith.mulf %11, %12 : vector<8x1xf32>
    %14 = tpu.concatenate %6, %8 in 0 : vector<8x128xf32>, vector<8x128xf32> -> vector<16x128xf32>
    %cst_7 = arith.constant dense<0.000000e+00> : vector<16x8xf32>
    %15 = tpu.matmul %14, %3, %cst_7 {dimension_numbers = #tpu.dot_dimension_numbers<[1], [1], [0], [0], [0, 0, 1, 0], [], []>} : vector<16x128xf32>, vector<8x128xf32>, vector<16x8xf32> -> vector<16x8xf32>
    %cst_8 = arith.constant dense<0.000000e+00> : vector<16x8xf32>
    %16 = tpu.matmul %14, %4, %cst_8 {dimension_numbers = #tpu.dot_dimension_numbers<[1], [1], [0], [0], [0, 0, 1, 0], [], []>} : vector<16x128xf32>, vector<8x128xf32>, vector<16x8xf32> -> vector<16x8xf32>
    %17 = tpu.iota {dimensions = array<i32: 0>} : vector<16x8xi32>
    %18 = tpu.iota {dimensions = array<i32: 1>} : vector<16x8xi32>
    %c8_i32_9 = arith.constant 8 : i32
    %19 = vector.broadcast %c8_i32_9 : i32 to vector<16x8xi32>
    %20 = arith.cmpi slt, %17, %19 : vector<16x8xi32>
    %21 = vector.broadcast %1 : i32 to vector<16x8xi32>
    %22 = arith.addi %17, %21 : vector<16x8xi32>
    %23 = arith.cmpi eq, %18, %22 : vector<16x8xi32>
    %24 = arith.andi %20, %23 : vector<16x8xi1>
    %c8_i32_10 = arith.constant 8 : i32
    %25 = vector.broadcast %c8_i32_10 : i32 to vector<16x8xi32>
    %26 = arith.cmpi sge, %17, %25 : vector<16x8xi32>
    %c8_i32_11 = arith.constant 8 : i32
    %27 = vector.broadcast %c8_i32_11 : i32 to vector<16x8xi32>
    %28 = arith.subi %17, %27 : vector<16x8xi32>
    %29 = vector.broadcast %1 : i32 to vector<16x8xi32>
    %30 = arith.addi %28, %29 : vector<16x8xi32>
    %31 = arith.cmpi eq, %18, %30 : vector<16x8xi32>
    %32 = arith.andi %26, %31 : vector<16x8xi1>
    %33 = vector.broadcast %2 : f32 to vector<16x8xf32>
    %34 = arith.mulf %15, %33 : vector<16x8xf32>
    %cst_12 = arith.constant 0.000000e+00 : f32
    %35 = vector.broadcast %cst_12 : f32 to vector<16x8xf32>
    %36 = arith.select %24, %35, %34 : vector<16x8xi1>, vector<16x8xf32>
    %37 = vector.broadcast %2 : f32 to vector<16x8xf32>
    %38 = arith.mulf %16, %37 : vector<16x8xf32>
    %cst_13 = arith.constant 0.000000e+00 : f32
    %39 = vector.broadcast %cst_13 : f32 to vector<16x8xf32>
    %40 = arith.select %32, %39, %38 : vector<16x8xi1>, vector<16x8xf32>
    %cst_14 = arith.constant dense<0xFF800000> : vector<16xf32>
    %41 = vector.multi_reduction <maximumf>, %36, %cst_14 [1] : vector<16x8xf32> to vector<16xf32>
    %42 = vector.shape_cast %41 : vector<16xf32> to vector<16x1xf32>
    %cst_15 = arith.constant dense<0xFF800000> : vector<16xf32>
    %43 = vector.multi_reduction <maximumf>, %40, %cst_15 [1] : vector<16x8xf32> to vector<16xf32>
    %44 = vector.shape_cast %43 : vector<16xf32> to vector<16x1xf32>
    %45 = arith.maximumf %42, %44 : vector<16x1xf32>
    %46 = vector.broadcast %45 : vector<16x1xf32> to vector<16x8xf32>
    %47 = arith.subf %36, %46 : vector<16x8xf32>
    %48 = math.exp %47 : vector<16x8xf32>
    %cst_16 = arith.constant dense<0.000000e+00> : vector<16xf32>
    %49 = vector.multi_reduction <add>, %48, %cst_16 [1] : vector<16x8xf32> to vector<16xf32>
    %50 = vector.shape_cast %49 : vector<16xf32> to vector<16x1xf32>
    %51 = vector.broadcast %45 : vector<16x1xf32> to vector<16x8xf32>
    %52 = arith.subf %40, %51 : vector<16x8xf32>
    %53 = math.exp %52 : vector<16x8xf32>
    %cst_17 = arith.constant dense<0.000000e+00> : vector<16xf32>
    %54 = vector.multi_reduction <add>, %53, %cst_17 [1] : vector<16x8xf32> to vector<16xf32>
    %55 = vector.shape_cast %54 : vector<16xf32> to vector<16x1xf32>
    %56 = arith.addf %50, %55 : vector<16x1xf32>
    %57 = math.log %56 : vector<16x1xf32>
    %58 = arith.addf %45, %57 : vector<16x1xf32>
    %59 = vector.extract_strided_slice %58 {offsets = [0, 0], sizes = [8, 1], strides = [1, 1]} : vector<16x1xf32> to vector<8x1xf32>
    %60 = arith.subf %59, %13 : vector<8x1xf32>
    %61 = vector.extract_strided_slice %58 {offsets = [8, 0], sizes = [8, 1], strides = [1, 1]} : vector<16x1xf32> to vector<8x1xf32>
    %62 = arith.subf %61, %13 : vector<8x1xf32>
    %63 = arith.addf %60, %62 : vector<8x1xf32>
    %c0_18 = arith.constant 0 : index
    %c0_19 = arith.constant 0 : index
    %64 = vector.load %arg4[%c0_18, %c0_19] : memref<8x128xf32, #tpu.memory_space<vmem>>, vector<8x128xf32>
    %c0_20 = arith.constant 0 : index
    %c0_21 = arith.constant 0 : index
    %65 = vector.load %arg5[%c0_20, %c0_21] : memref<8x128xbf16, #tpu.memory_space<vmem>>, vector<8x128xbf16>
    %66 = arith.extf %65 : vector<8x128xbf16> to vector<8x128xf32>
    %67 = math.absf %64 : vector<8x128xf32>
    %cst_22 = arith.constant 0.000000e+00 : f32
    %68 = vector.broadcast %cst_22 : f32 to vector<8x128xf32>
    %69 = arith.subf %68, %67 : vector<8x128xf32>
    %70 = math.exp %69 : vector<8x128xf32>
    %cst_23 = arith.constant 2.000000e+01 : f32
    %71 = vector.broadcast %cst_23 : f32 to vector<8x128xf32>
    %72 = arith.cmpf ogt, %67, %71 : vector<8x128xf32>
    %cst_24 = arith.constant 1.000000e+00 : f32
    %73 = vector.broadcast %cst_24 : f32 to vector<8x128xf32>
    %74 = arith.addf %73, %70 : vector<8x128xf32>
    %75 = math.log %74 : vector<8x128xf32>
    %76 = arith.select %72, %70, %75 : vector<8x128xi1>, vector<8x128xf32>
    %cst_25 = arith.constant 0.000000e+00 : f32
    %77 = vector.broadcast %cst_25 : f32 to vector<8x128xf32>
    %78 = arith.maximumf %64, %77 : vector<8x128xf32>
    %79 = arith.mulf %64, %66 : vector<8x128xf32>
    %80 = arith.subf %78, %79 : vector<8x128xf32>
    %81 = arith.addf %80, %76 : vector<8x128xf32>
    %82 = tpu.iota {dimensions = array<i32: 1>} : vector<8x128xi32>
    %c32_i32 = arith.constant 32 : i32
    %83 = vector.broadcast %c32_i32 : i32 to vector<8x128xi32>
    %84 = arith.cmpi slt, %82, %83 : vector<8x128xi32>
    %cst_26 = arith.constant 0.000000e+00 : f32
    %85 = vector.broadcast %cst_26 : f32 to vector<8x128xf32>
    %86 = arith.select %84, %81, %85 : vector<8x128xi1>, vector<8x128xf32>
    %cst_27 = arith.constant dense<0.000000e+00> : vector<8xf32>
    %87 = vector.multi_reduction <add>, %86, %cst_27 [1] : vector<8x128xf32> to vector<8xf32>
    %88 = vector.shape_cast %87 : vector<8xf32> to vector<8x1xf32>
    %89 = tpu.iota {dimensions = array<i32: 1>} : vector<8x128xi32>
    %c0_i32 = arith.constant 0 : i32
    %90 = vector.broadcast %c0_i32 : i32 to vector<8x128xi32>
    %91 = arith.cmpi eq, %89, %90 : vector<8x128xi32>
    %c1_i32 = arith.constant 1 : i32
    %92 = vector.broadcast %c1_i32 : i32 to vector<8x128xi32>
    %93 = arith.cmpi eq, %89, %92 : vector<8x128xi32>
    %cst_28 = arith.constant 0.000000e+00 : f32
    %94 = vector.shape_cast %88 : vector<8x1xf32> to vector<8x1xf32>
    %95 = vector.broadcast %94 : vector<8x1xf32> to vector<8x128xf32>
    %96 = vector.broadcast %cst_28 : f32 to vector<8x128xf32>
    %97 = arith.select %93, %95, %96 : vector<8x128xi1>, vector<8x128xf32>
    %98 = vector.shape_cast %63 : vector<8x1xf32> to vector<8x1xf32>
    %99 = vector.broadcast %98 : vector<8x1xf32> to vector<8x128xf32>
    %100 = arith.select %91, %99, %97 : vector<8x128xi1>, vector<8x128xf32>
    %c0_29 = arith.constant 0 : index
    %c0_30 = arith.constant 0 : index
    %101 = vector.load %arg6[%c0_29, %c0_30] : memref<8x128xf32, #tpu.memory_space<vmem>>, vector<8x128xf32>
    tpu.vector_store %arg6[%c0_29, %c0_30], %100 {strides = array<i32>} : memref<8x128xf32, #tpu.memory_space<vmem>>, vector<8x128xf32>,
    return
  }
  func.func @transform_0(%arg0: i32) -> (i32, i32) {
    %c0_i32 = arith.constant 0 : i32
    %c0_i32_0 = arith.constant 0 : i32
    %c0_i32_1 = arith.constant 0 : i32
    return %c0_i32, %c0_i32_0 : i32, i32
  }
  func.func @transform_1(%arg0: i32) -> (i32, i32) {
    %c0_i32 = arith.constant 0 : i32
    %c0_i32_0 = arith.constant 0 : i32
    %c0_i32_1 = arith.constant 0 : i32
    return %c0_i32, %c0_i32_0 : i32, i32
  }
  func.func @transform_2(%arg0: i32) -> (i32, i32) {
    %c0_i32 = arith.constant 0 : i32
    %c0_i32_0 = arith.constant 0 : i32
    %c0_i32_1 = arith.constant 0 : i32
    return %c0_i32, %c0_i32_0 : i32, i32
  }
  func.func @transform_3(%arg0: i32) -> (i32, i32) {
    %c0_i32 = arith.constant 0 : i32
    %c0_i32_0 = arith.constant 0 : i32
    return %arg0, %c0_i32 : i32, i32
  }
  func.func @transform_4(%arg0: i32) -> (i32, i32) {
    %c0_i32 = arith.constant 0 : i32
    %c0_i32_0 = arith.constant 0 : i32
    return %arg0, %c0_i32 : i32, i32
  }
  func.func @transform_5(%arg0: i32) -> (i32, i32) {
    %c0_i32 = arith.constant 0 : i32
    %c0_i32_0 = arith.constant 0 : i32
    return %arg0, %c0_i32 : i32, i32
  }
}

module attributes {stable_mosaic.version = 11 : i64} {
  func.func @_loss_kernel(%arg0: i32, %arg1: memref<1x1xf32, #tpu.memory_space<smem>>, %arg2: memref<8x128xf32, #tpu.memory_space<vmem>>, %arg3: memref<8x128xf32, #tpu.memory_space<vmem>>, %arg4: memref<8x128xf32, #tpu.memory_space<vmem>>, %arg5: memref<8x128xbf16, #tpu.memory_space<vmem>>, %arg6: memref<8x128xf32, #tpu.memory_space<vmem>>) attributes {dimension_semantics = [#tpu.dimension_semantics<parallel>], iteration_bounds = array<i64: 1>, scalar_prefetch = 0 : i64, scratch_operands = 0 : i64, tpu.core_type = #tpu.core_type<tc>, window_params = [{transform_indices = @transform_0, window_bounds = array<i64: 1, 1>}, {pipeline_mode = #tpu.pipeline_mode<synchronous>, transform_indices = @transform_1, window_bounds = array<i64: 8, 128>}, {pipeline_mode = #tpu.pipeline_mode<synchronous>, transform_indices = @transform_2, window_bounds = array<i64: 8, 128>}, {transform_indices = @transform_3, window_bounds = array<i64: 8, 128>}, {transform_indices = @transform_4, window_bounds = array<i64: 8, 128>}, {transform_indices = @transform_5, window_bounds = array<i64: 8, 128>}]} {
    %c8_i32 = arith.constant 8 : i32
    %0 = arith.muli %arg0, %c8_i32 : i32
    %1 = tpu.assume_multiple %0, 8 : i32
    %c0 = arith.constant 0 : index
    %c0_0 = arith.constant 0 : index
    %2 = memref.load %arg1[%c0, %c0_0] : memref<1x1xf32, #tpu.memory_space<smem>>
    %c0_1 = arith.constant 0 : index
    %c0_2 = arith.constant 0 : index
    %3 = vector.load %arg2[%c0_1, %c0_2] : memref<8x128xf32, #tpu.memory_space<vmem>>, vector<8x128xf32>
    %c0_3 = arith.constant 0 : index
    %c0_4 = arith.constant 0 : index
    %4 = vector.load %arg3[%c0_3, %c0_4] : memref<8x128xf32, #tpu.memory_space<vmem>>, vector<8x128xf32>
    %5 = arith.index_cast %1 : i32 to index
    %c0_5 = arith.constant 0 : index
    %6 = vector.load %arg2[%5, %c0_5] : memref<8x128xf32, #tpu.memory_space<vmem>>, vector<8x128xf32>
    %7 = arith.index_cast %1 : i32 to index
    %c0_6 = arith.constant 0 : index
    %8 = vector.load %arg3[%7, %c0_6] : memref<8x128xf32, #tpu.memory_space<vmem>>, vector<8x128xf32>
    %9 = arith.mulf %6, %8 : vector<8x128xf32>
    %cst = arith.constant dense<0.000000e+00> : vector<8xf32>
    %10 = vector.multi_reduction <add>, %9, %cst [1] : vector<8x128xf32> to vector<8xf32>
    %11 = vector.shape_cast %10 : vector<8xf32> to vector<8x1xf32>
    %12 = vector.broadcast %2 : f32 to vector<8x1xf32>
    %13 = arith.mulf %11, %12 : vector<8x1xf32>
    %14 = tpu.concatenate %6, %8 in 0 : vector<8x128xf32>, vector<8x128xf32> -> vector<16x128xf32>
    %cst_7 = arith.constant dense<0.000000e+00> : vector<16x8xf32>
    %15 = tpu.matmul %14, %3, %cst_7 {dimension_numbers = #tpu.dot_dimension_numbers<[1], [1], [0], [0], [0, 0, 1, 0], [], []>} : vector<16x128xf32>, vector<8x128xf32>, vector<16x8xf32> -> vector<16x8xf32>
    %cst_8 = arith.constant dense<0.000000e+00> : vector<16x8xf32>
    %16 = tpu.matmul %14, %4, %cst_8 {dimension_numbers = #tpu.dot_dimension_numbers<[1], [1], [0], [0], [0, 0, 1, 0], [], []>} : vector<16x128xf32>, vector<8x128xf32>, vector<16x8xf32> -> vector<16x8xf32>
    %17 = tpu.iota {dimensions = array<i32: 0>} : vector<16x8xi32>
    %18 = tpu.iota {dimensions = array<i32: 1>} : vector<16x8xi32>
    %c8_i32_9 = arith.constant 8 : i32
    %19 = vector.broadcast %c8_i32_9 : i32 to vector<16x8xi32>
    %20 = arith.cmpi slt, %17, %19 : vector<16x8xi32>
    %21 = vector.broadcast %1 : i32 to vector<16x8xi32>
    %22 = arith.addi %17, %21 : vector<16x8xi32>
    %23 = arith.cmpi eq, %18, %22 : vector<16x8xi32>
    %24 = arith.andi %20, %23 : vector<16x8xi1>
    %c8_i32_10 = arith.constant 8 : i32
    %25 = vector.broadcast %c8_i32_10 : i32 to vector<16x8xi32>
    %26 = arith.cmpi sge, %17, %25 : vector<16x8xi32>
    %c8_i32_11 = arith.constant 8 : i32
    %27 = vector.broadcast %c8_i32_11 : i32 to vector<16x8xi32>
    %28 = arith.subi %17, %27 : vector<16x8xi32>
    %29 = vector.broadcast %1 : i32 to vector<16x8xi32>
    %30 = arith.addi %28, %29 : vector<16x8xi32>
    %31 = arith.cmpi eq, %18, %30 : vector<16x8xi32>
    %32 = arith.andi %26, %31 : vector<16x8xi1>
    %33 = vector.broadcast %2 : f32 to vector<16x8xf32>
    %34 = arith.mulf %15, %33 : vector<16x8xf32>
    %cst_12 = arith.constant 0.000000e+00 : f32
    %35 = vector.broadcast %cst_12 : f32 to vector<16x8xf32>
    %36 = arith.select %24, %35, %34 : vector<16x8xi1>, vector<16x8xf32>
    %37 = vector.broadcast %2 : f32 to vector<16x8xf32>
    %38 = arith.mulf %16, %37 : vector<16x8xf32>
    %cst_13 = arith.constant 0.000000e+00 : f32
    %39 = vector.broadcast %cst_13 : f32 to vector<16x8xf32>
    %40 = arith.select %32, %39, %38 : vector<16x8xi1>, vector<16x8xf32>
    %cst_14 = arith.constant dense<0xFF800000> : vector<16xf32>
    %41 = vector.multi_reduction <maximumf>, %36, %cst_14 [1] : vector<16x8xf32> to vector<16xf32>
    %42 = vector.shape_cast %41 : vector<16xf32> to vector<16x1xf32>
    %cst_15 = arith.constant dense<0xFF800000> : vector<16xf32>
    %43 = vector.multi_reduction <maximumf>, %40, %cst_15 [1] : vector<16x8xf32> to vector<16xf32>
    %44 = vector.shape_cast %43 : vector<16xf32> to vector<16x1xf32>
    %45 = arith.maximumf %42, %44 : vector<16x1xf32>
    %46 = vector.broadcast %45 : vector<16x1xf32> to vector<16x8xf32>
    %47 = arith.subf %36, %46 : vector<16x8xf32>
    %48 = math.exp %47 : vector<16x8xf32>
    %cst_16 = arith.constant dense<0.000000e+00> : vector<16xf32>
    %49 = vector.multi_reduction <add>, %48, %cst_16 [1] : vector<16x8xf32> to vector<16xf32>
    %50 = vector.shape_cast %49 : vector<16xf32> to vector<16x1xf32>
    %51 = vector.broadcast %45 : vector<16x1xf32> to vector<16x8xf32>
    %52 = arith.subf %40, %51 : vector<16x8xf32>
    %53 = math.exp %52 : vector<16x8xf32>
    %cst_17 = arith.constant dense<0.000000e+00> : vector<16xf32>
    %54 = vector.multi_reduction <add>, %53, %cst_17 [1] : vector<16x8xf32> to vector<16xf32>
    %55 = vector.shape_cast %54 : vector<16xf32> to vector<16x1xf32>
    %56 = arith.addf %50, %55 : vector<16x1xf32>
    %57 = math.log %56 : vector<16x1xf32>
    %58 = arith.addf %45, %57 : vector<16x1xf32>
    %59 = vector.extract_strided_slice %58 {offsets = [0, 0], sizes = [8, 1], strides = [1, 1]} : vector<16x1xf32> to vector<8x1xf32>
    %60 = arith.subf %59, %13 : vector<8x1xf32>
    %61 = vector.extract_strided_slice %58 {offsets = [8, 0], sizes = [8, 1], strides = [1, 1]} : vector<16x1xf32> to vector<8x1xf32>
    %62 = arith.subf %61, %13 : vector<8x1xf32>
    %63 = arith.addf %60, %62 : vector<8x1xf32>
    %c0_18 = arith.constant 0 : index
    %c0_19 = arith.constant 0 : index
    %64 = vector.load %arg4[%c0_18, %c0_19] : memref<8x128xf32, #tpu.memory_space<vmem>>, vector<8x128xf32>
    %c0_20 = arith.constant 0 : index
    %c0_21 = arith.constant 0 : index
    %65 = vector.load %arg5[%c0_20, %c0_21] : memref<8x128xbf16, #tpu.memory_space<vmem>>, vector<8x128xbf16>
    %66 = arith.extf %65 : vector<8x128xbf16> to vector<8x128xf32>
    %67 = math.absf %64 : vector<8x128xf32>
    %cst_22 = arith.constant 0.000000e+00 : f32
    %68 = vector.broadcast %cst_22 : f32 to vector<8x128xf32>
    %69 = arith.subf %68, %67 : vector<8x128xf32>
    %70 = math.exp %69 : vector<8x128xf32>
    %cst_23 = arith.constant 2.000000e+01 : f32
    %71 = vector.broadcast %cst_23 : f32 to vector<8x128xf32>
    %72 = arith.cmpf ogt, %67, %71 : vector<8x128xf32>
    %cst_24 = arith.constant 1.000000e+00 : f32
    %73 = vector.broadcast %cst_24 : f32 to vector<8x128xf32>
    %74 = arith.addf %73, %70 : vector<8x128xf32>
    %75 = math.log %74 : vector<8x128xf32>
    %76 = arith.select %72, %70, %75 : vector<8x128xi1>, vector<8x128xf32>
    %cst_25 = arith.constant 0.000000e+00 : f32
    %77 = vector.broadcast %cst_25 : f32 to vector<8x128xf32>
    %78 = arith.maximumf %64, %77 : vector<8x128xf32>
    %79 = arith.mulf %64, %66 : vector<8x128xf32>
    %80 = arith.subf %78, %79 : vector<8x128xf32>
    %81 = arith.addf %80, %76 : vector<8x128xf32>
    %82 = tpu.iota {dimensions = array<i32: 1>} : vector<8x128xi32>
    %c32_i32 = arith.constant 32 : i32
    %83 = vector.broadcast %c32_i32 : i32 to vector<8x128xi32>
    %84 = arith.cmpi slt, %82, %83 : vector<8x128xi32>
    %cst_26 = arith.constant 0.000000e+00 : f32
    %85 = vector.broadcast %cst_26 : f32 to vector<8x128xf32>
    %86 = arith.select %84, %81, %85 : vector<8x128xi1>, vector<8x128xf32>
    %cst_27 = arith.constant dense<0.000000e+00> : vector<8xf32>
    %87 = vector.multi_reduction <add>, %86, %cst_27 [1] : vector<8x128xf32> to vector<8xf32>
    %88 = vector.shape_cast %87 : vector<8xf32> to vector<8x1xf32>
    %89 = tpu.iota {dimensions = array<i32: 1>} : vector<8x128xi32>
    %c0_i32 = arith.constant 0 : i32
    %90 = vector.broadcast %c0_i32 : i32 to vector<8x128xi32>
    %91 = arith.cmpi eq, %89, %90 : vector<8x128xi32>
    %c1_i32 = arith.constant 1 : i32
    %92 = vector.broadcast %c1_i32 : i32 to vector<8x128xi32>
    %93 = arith.cmpi eq, %89, %92 : vector<8x128xi32>
    %cst_28 = arith.constant 0.000000e+00 : f32
    %94 = vector.shape_cast %88 : vector<8x1xf32> to vector<8x1xf32>
    %95 = vector.broadcast %94 : vector<8x1xf32> to vector<8x128xf32>
    %96 = vector.broadcast %cst_28 : f32 to vector<8x128xf32>
    %97 = arith.select %93, %95, %96 : vector<8x128xi1>, vector<8x128xf32>
    %98 = vector.shape_cast %63 : vector<8x1xf32> to vector<8x1xf32>
    %99 = vector.broadcast %98 : vector<8x1xf32> to vector<8x128xf32>
    %100 = arith.select %91, %99, %97 : vector<8x128xi1>, vector<8x128xf32>
    %c0_29 = arith.constant 0 : index
    %c0_30 = arith.constant 0 : index
    %101 = vector.load %arg6[%c0_29, %c0_30] : memref<8x128xf32, #tpu.memory_space<vmem>>, vector<8x128xf32>
    tpu.vector_store %arg6[%c0_29, %c0_30], %100 {strides = array<i32>} : memref<8x128xf32, #tpu.memory_space<vmem>>, vector<8x128xf32>,
    return
  }
  func.func @transform_0(%arg0: i32) -> (i32, i32) {
    %c0_i32 = arith.constant 0 : i32
    %c0_i32_0 = arith.constant 0 : i32
    %c0_i32_1 = arith.constant 0 : i32
    return %c0_i32, %c0_i32_0 : i32, i32
  }
  func.func @transform_1(%arg0: i32) -> (i32, i32) {
    %c0_i32 = arith.constant 0 : i32
    %c0_i32_0 = arith.constant 0 : i32
    %c0_i32_1 = arith.constant 0 : i32
    return %c0_i32, %c0_i32_0 : i32, i32
  }
  func.func @transform_2(%arg0: i32) -> (i32, i32) {
    %c0_i32 = arith.constant 0 : i32
    %c0_i32_0 = arith.constant 0 : i32
    %c0_i32_1 = arith.constant 0 : i32
    return %c0_i32, %c0_i32_0 : i32, i32
  }
  func.func @transform_3(%arg0: i32) -> (i32, i32) {
    %c0_i32 = arith.constant 0 : i32
    %c0_i32_0 = arith.constant 0 : i32
    return %arg0, %c0_i32 : i32, i32
  }
  func.func @transform_4(%arg0: i32) -> (i32, i32) {
    %c0_i32 = arith.constant 0 : i32
    %c0_i32_0 = arith.constant 0 : i32
    return %arg0, %c0_i32 : i32, i32
  }
  func.func @transform_5(%arg0: i32) -> (i32, i32) {
    %c0_i32 = arith.constant 0 : i32
    %c0_i32_0 = arith.constant 0 : i32
    return %arg0, %c0_i32 : i32, i32
  }
}

</mosaic_0001>

<llo_original>
// kernel: tpu_custom_call.1
$region0: #{tpu_custom_call.1}
  #allocation0 [shape = 'u32[]', space=smem, size = 0x4, offset = 0x4, fixed_abs, tag = 'smem constant byte address 0x4 - core index']
  #allocation1 [shape = 'u32[144,128]{1,0:T(1,128)}', space=vmem, size = 0x12000, scoped, tag = 'internal scratch']
  #allocation2 [shape = 'f32[1,1]{1,0:T(1,128)S(6)}', space=smem, size = 0x200, scoped, tag = 'scoped memory for tpu_custom_call.1']
  %s0 = inlined_call_operand.<no memory space> [shape: f32[1,1], index: 0, kind: input, shape index: {}]
  %s1 = inlined_call_operand.hbm [shape: f32[8,128], index: 1, kind: input, shape index: {}]
  %s2 = inlined_call_operand.hbm [shape: f32[8,128], index: 2, kind: input, shape index: {}]
  %s3 = inlined_call_operand.vmem [shape: f32[8,128], index: 3, kind: input, shape index: {}]
  %s4 = inlined_call_operand.vmem [shape: bf16[8,128], index: 4, kind: input, shape index: {}]
  %s5 = inlined_call_operand.hbm [shape: f32[8,128], index: 5, kind: output, shape index: {}]
  %s6 = sld [smem:[#allocation0]]
  $region38: #{tpu_custom_call.1} parent=0
    _
  %s8 = ssub.s32 1, %s6
  %s9 = scalar_select 0, %s8, %s6
  %10 = sst [smem:[#allocation2]] %s0
  $region1: #{tpu_custom_call.1} parent=0
    #allocation3 [shape = 'u8[4096]{0}', space=vmem, size = 0x1000, scoped, tag = 'input window, operand 1, single buffered']
    #allocation4 [shape = 's32[1]{0}', space=sflag, size = 0x4, scoped, tag = 'scoped memory for tpu_custom_call.1']
    #allocation5 [shape = 's32[1]{0}', space=sflag, size = 0x4, scoped, tag = 'scoped memory for tpu_custom_call.1']
    #allocation6 [shape = 'u8[4096]{0}', space=vmem, size = 0x1000, scoped, tag = 'input window, operand 2, single buffered']
    #allocation7 [shape = 's32[1]{0}', space=sflag, size = 0x4, scoped, tag = 'scoped memory for tpu_custom_call.1']
    #allocation8 [shape = 'u8[4096]{0}', space=vmem, size = 0x1000, scoped, tag = 'output window, operand 0, single buffered']
    %11 = vsyncpa [#allocation4], 0
    %12 = vsyncpa [#allocation7], 0
    %13 = vsyncpa [#allocation5], 0
    // Predicated region
    $region2: #{tpu_custom_call.1} parent=1 // pred_check
      _
    $region3: #{tpu_custom_call.1} parent=1 // pred_check_branch
      %15 = sbr.rel (0) target = $region5
    $region4: #{tpu_custom_call.1} parent=1 // pred_region
      _
    $region5: #{tpu_custom_call.1} parent=1 // pred_fallthru
      _
    // Predicated region
    $region6: #{tpu_custom_call.1} parent=1 // pred_check
      _
    $region7: #{tpu_custom_call.1} parent=1 // pred_check_branch
      %17 = sbr.rel (0) target = $region9
    $region8: #{tpu_custom_call.1} parent=1 // pred_region
      %s19 = ssub.s32 128, 128
      %20 = vsyncadd [#allocation4], %s19
      %s22 = sshll.u32 [#allocation3], 4
      %s23 = int_to_ptr.vmem [resolvable:$true] %s22
      %25 = dma.hbm_to_vmem [thread:$0]  %s1, 128, %s23, [#allocation4]
    $region9: #{tpu_custom_call.1} parent=1 // pred_fallthru
      _
    // Predicated region
    $region10: #{tpu_custom_call.1} parent=1 // pred_check
      _
    $region11: #{tpu_custom_call.1} parent=1 // pred_check_branch
      %27 = sbr.rel (0) target = $region13
    $region12: #{tpu_custom_call.1} parent=1 // pred_region
      %s29 = ssub.s32 128, 128
      %30 = vsyncadd [#allocation7], %s29
      %s32 = sshll.u32 [#allocation6], 4
      %s33 = int_to_ptr.vmem [resolvable:$true] %s32
      %35 = dma.hbm_to_vmem [thread:$0]  %s2, 128, %s33, [#allocation7]
    $region13: #{tpu_custom_call.1} parent=1 // pred_fallthru
      _
    // Predicated region
    $region14: #{tpu_custom_call.1} parent=1 // pred_check
      _
    $region15: #{tpu_custom_call.1} parent=1 // pred_check_branch
      %37 = sbr.rel (0) target = $region17
    $region16: #{tpu_custom_call.1} parent=1 // pred_region
      _
    $region17: #{tpu_custom_call.1} parent=1 // pred_fallthru
      _
    // Predicated region
    $region18: #{tpu_custom_call.1} parent=1 // pred_check
      _
    $region19: #{tpu_custom_call.1} parent=1 // pred_check_branch
      %39 = sbr.rel (0) target = $region21
    $region20: #{tpu_custom_call.1} parent=1 // pred_region
      _
    $region21: #{tpu_custom_call.1} parent=1 // pred_fallthru
      _
    // Predicated region
    $region22: #{tpu_custom_call.1} parent=1 // pred_check
      _
    $region23: #{tpu_custom_call.1} parent=1 // pred_check_branch
      %41 = sbr.rel (0) target = $region25
    $region24: #{tpu_custom_call.1} parent=1 // pred_region
      %42 = dma.done [#allocation4], 128
    $region25: #{tpu_custom_call.1} parent=1 // pred_fallthru
      _
    // Predicated region
    $region26: #{tpu_custom_call.1} parent=1 // pred_check
      _
    $region27: #{tpu_custom_call.1} parent=1 // pred_check_branch
      %44 = sbr.rel (0) target = $region29
    $region28: #{tpu_custom_call.1} parent=1 // pred_region
      %45 = dma.done [#allocation7], 128
    $region29: #{tpu_custom_call.1} parent=1 // pred_fallthru
      _
    %s46 = smul.u32 0, 8
    %s47 = sld [smem:[#allocation2]]
    %v48 = vld [vmem:[#allocation3] sm:$0xff]
    %v49 = vld [vmem:[#allocation6] sm:$0xff]
    %s50 = scalar_lea.vmem [#allocation3], %s46
    %v51 = vld [vmem:[%s50] sm:$0xff]
    %s52 = scalar_lea.vmem [#allocation6], %s46
    %v53 = vld [vmem:[%s52] sm:$0xff]
    %v54 = vmul.f32 %v51, %v53
    %55 = vadd.xlane.f32.xlu0 %v54
    %v56 = vpop.xlane.xlu0 %55
    %v57 = vstv %s47
    %v58 = vmul.f32 %v56, %v57
    %59 = vmatprep.subr.mxu0 0.0
    %60 = vmatpush1.xpose.msra.mxu0 %v48
    %61 = vmatprep.subr.mxu0 0.0
    %62 = vmatpush1.xpose.msra.mxu0 0.0
    %63 = vmatprep.subr.mxu0 0.0
    %64 = vmatpush1.xpose.msra.mxu0 0.0
    %65 = vmatprep.subr.mxu0 0.0
    %66 = vmatpush1.xpose.msra.mxu0 0.0
    %67 = vmatprep.subr.mxu0 0.0
    %68 = vmatpush1.xpose.msra.mxu0 0.0
    %69 = vmatprep.subr.mxu0 0.0
    %70 = vmatpush1.xpose.msra.mxu0 0.0
    %71 = vmatprep.subr.mxu0 0.0
    %72 = vmatpush1.xpose.msra.mxu0 0.0
    %73 = vmatprep.subr.mxu0 0.0
    %74 = vmatpush1.xpose.msra.mxu0 0.0
    %75 = vmatprep.subr.mxu0 0.0
    %76 = vmatpush1.xpose.msra.mxu0 0.0
    %77 = vmatprep.subr.mxu0 0.0
    %78 = vmatpush1.xpose.msra.mxu0 0.0
    %79 = vmatprep.subr.mxu0 0.0
    %80 = vmatpush1.xpose.msra.mxu0 0.0
    %81 = vmatprep.subr.mxu0 0.0
    %82 = vmatpush1.xpose.msra.mxu0 0.0
    %83 = vmatprep.subr.mxu0 0.0
    %84 = vmatpush1.xpose.msra.mxu0 0.0
    %85 = vmatprep.subr.mxu0 0.0
    %86 = vmatpush1.xpose.msra.mxu0 0.0
    %87 = vmatprep.subr.mxu0 0.0
    %88 = vmatpush1.xpose.msra.mxu0 0.0
    %89 = vmatprep.subr.mxu0 0.0
    %90 = vmatpush1.xpose.msra.mxu0 0.0
    %91 = vmatprep.subr.mxu0 0.0
    %92 = vmatpush1.xpose.msra.mxu0 0.0
    %93 = vmatprep.subr.mxu0 0.0
    %94 = vmatpush1.xpose.msra.mxu0 0.0
    %95 = vmatprep.subr.mxu0 0.0
    %96 = vmatpush1.xpose.msra.mxu0 0.0
    %97 = vmatprep.subr.mxu0 0.0
    %98 = vmatpush1.xpose.msra.mxu0 0.0
    %99 = vmatprep.subr.mxu0 0.0
    %100 = vmatpush1.xpose.msra.mxu0 0.0
    %101 = vmatprep.subr.mxu0 0.0
    %102 = vmatpush1.xpose.msra.mxu0 0.0
    %103 = vmatprep.subr.mxu0 0.0
    %104 = vmatpush1.xpose.msra.mxu0 0.0
    %105 = vmatprep.subr.mxu0 0.0
    %106 = vmatpush1.xpose.msra.mxu0 0.0
    %107 = vmatprep.subr.mxu0 0.0
    %108 = vmatpush1.xpose.msra.mxu0 0.0
    %109 = vmatprep.subr.mxu0 0.0
    %110 = vmatpush1.xpose.msra.mxu0 0.0
    %111 = vmatprep.subr.mxu0 0.0
    %112 = vmatpush1.xpose.msra.mxu0 0.0
    %113 = vmatprep.subr.mxu0 0.0
    %114 = vmatpush1.xpose.msra.mxu0 0.0
    %115 = vmatprep.subr.mxu0 0.0
    %116 = vmatpush1.xpose.msra.mxu0 0.0
    %117 = vmatprep.subr.mxu0 0.0
    %118 = vmatpush1.xpose.msra.mxu0 0.0
    %119 = vmatprep.subr.mxu0 0.0
    %120 = vmatpush1.xpose.msra.mxu0 0.0
    %121 = vmatprep.subr.mxu0 0.0
    %122 = vmatpush1.xpose.msra.mxu0 0.0
    %123 = vmatprep.mubr.f32.mxu0 0.0
    %124 = vmatmul.mubr.f32.gmra.mrb[0].mxu0 %v51
    %v125 = vpop.f32.mrb[0].mxu0
    %v126 = vadd.f32 0.0, %v125
    %v127 = vpop.f32.mrb[0].mxu0
    %128 = vmatprep.mubr.f32.mxu0 0.0
    %129 = vmatmul.mubr.f32.gmra.mrb[0].mxu0 %v53
    %v130 = vpop.f32.mrb[0].mxu0
    %v131 = vadd.f32 0.0, %v130
    %v132 = vpop.f32.mrb[0].mxu0
    %133 = vdwg.mxu0
    %134 = vmatprep.subr.mxu0 0.0
    %135 = vmatpush1.xpose.msra.mxu0 %v49
    %136 = vmatprep.subr.mxu0 0.0
    %137 = vmatpush1.xpose.msra.mxu0 0.0
    %138 = vmatprep.subr.mxu0 0.0
    %139 = vmatpush1.xpose.msra.mxu0 0.0
    %140 = vmatprep.subr.mxu0 0.0
    %141 = vmatpush1.xpose.msra.mxu0 0.0
    %142 = vmatprep.subr.mxu0 0.0
    %143 = vmatpush1.xpose.msra.mxu0 0.0
    %144 = vmatprep.subr.mxu0 0.0
    %145 = vmatpush1.xpose.msra.mxu0 0.0
    %146 = vmatprep.subr.mxu0 0.0
    %147 = vmatpush1.xpose.msra.mxu0 0.0
    %148 = vmatprep.subr.mxu0 0.0
    %149 = vmatpush1.xpose.msra.mxu0 0.0
    %150 = vmatprep.subr.mxu0 0.0
    %151 = vmatpush1.xpose.msra.mxu0 0.0
    %152 = vmatprep.subr.mxu0 0.0
    %153 = vmatpush1.xpose.msra.mxu0 0.0
    %154 = vmatprep.subr.mxu0 0.0
    %155 = vmatpush1.xpose.msra.mxu0 0.0
    %156 = vmatprep.subr.mxu0 0.0
    %157 = vmatpush1.xpose.msra.mxu0 0.0
    %158 = vmatprep.subr.mxu0 0.0
    %159 = vmatpush1.xpose.msra.mxu0 0.0
    %160 = vmatprep.subr.mxu0 0.0
    %161 = vmatpush1.xpose.msra.mxu0 0.0
    %162 = vmatprep.subr.mxu0 0.0
    %163 = vmatpush1.xpose.msra.mxu0 0.0
    %164 = vmatprep.subr.mxu0 0.0
    %165 = vmatpush1.xpose.msra.mxu0 0.0
    %166 = vmatprep.subr.mxu0 0.0
    %167 = vmatpush1.xpose.msra.mxu0 0.0
    %168 = vmatprep.subr.mxu0 0.0
    %169 = vmatpush1.xpose.msra.mxu0 0.0
    %170 = vmatprep.subr.mxu0 0.0
    %171 = vmatpush1.xpose.msra.mxu0 0.0
    %172 = vmatprep.subr.mxu0 0.0
    %173 = vmatpush1.xpose.msra.mxu0 0.0
    %174 = vmatprep.subr.mxu0 0.0
    %175 = vmatpush1.xpose.msra.mxu0 0.0
    %176 = vmatprep.subr.mxu0 0.0
    %177 = vmatpush1.xpose.msra.mxu0 0.0
    %178 = vmatprep.subr.mxu0 0.0
    %179 = vmatpush1.xpose.msra.mxu0 0.0
    %180 = vmatprep.subr.mxu0 0.0
    %181 = vmatpush1.xpose.msra.mxu0 0.0
    %182 = vmatprep.subr.mxu0 0.0
    %183 = vmatpush1.xpose.msra.mxu0 0.0
    %184 = vmatprep.subr.mxu0 0.0
    %185 = vmatpush1.xpose.msra.mxu0 0.0
    %186 = vmatprep.subr.mxu0 0.0
    %187 = vmatpush1.xpose.msra.mxu0 0.0
    %188 = vmatprep.subr.mxu0 0.0
    %189 = vmatpush1.xpose.msra.mxu0 0.0
    %190 = vmatprep.subr.mxu0 0.0
    %191 = vmatpush1.xpose.msra.mxu0 0.0
    %192 = vmatprep.subr.mxu0 0.0
    %193 = vmatpush1.xpose.msra.mxu0 0.0
    %194 = vmatprep.subr.mxu0 0.0
    %195 = vmatpush1.xpose.msra.mxu0 0.0
    %196 = vmatprep.subr.mxu0 0.0
    %197 = vmatpush1.xpose.msra.mxu0 0.0
    %198 = vmatprep.mubr.f32.mxu0 0.0
    %199 = vmatmul.mubr.f32.gmra.mrb[0].mxu0 %v51
    %v200 = vpop.f32.mrb[0].mxu0
    %v201 = vadd.f32 0.0, %v200
    %v202 = vpop.f32.mrb[0].mxu0
    %203 = vmatprep.mubr.f32.mxu0 0.0
    %204 = vmatmul.mubr.f32.gmra.mrb[0].mxu0 %v53
    %v205 = vpop.f32.mrb[0].mxu0
    %v206 = vadd.f32 0.0, %v205
    %v207 = vpop.f32.mrb[0].mxu0
    %208 = vdwg.mxu0
    %v209 = vlaneseq
    %v210 = vshrl.u32 %v209, 7
    %v211 = vadd.s32 %v210, 8
    %v212 = vlaneseq
    %v213 = vand.u32 %v212, 127
    %vm214 = vcmp.lt.s32.totalorder %v210, 8
    %vm215 = vcmp.lt.s32.totalorder %v211, 8
    %v216 = vstv %s46
    %v217 = vadd.s32 %v210, %v216
    %v218 = vadd.s32 %v211, %v216
    %vm219 = vcmp.eq.s32.totalorder %v213, %v217
    %vm220 = vcmp.eq.s32.totalorder %v213, %v218
    %vm221 = vmand %vm214, %vm219
    %vm222 = vmand %vm215, %vm220
    %vm223 = vcmp.ge.s32.totalorder %v210, 8
    %vm224 = vcmp.ge.s32.totalorder %v211, 8
    %v225 = vsub.s32 %v210, 8
    %v226 = vadd.s32 %v225, %v216
    %vm227 = vcmp.eq.s32.totalorder %v213, %v226
    %vm228 = vmand %vm223, %vm227
    %vm229 = vmand %vm224, %vm219
    %v230 = vmul.f32 %v126, %v57
    %v231 = vmul.f32 %v131, %v57
    %v232 = vsel %vm221, 0.0, %v230
    %v233 = vsel %vm222, 0.0, %v231
    %v234 = vmul.f32 %v201, %v57
    %v235 = vmul.f32 %v206, %v57
    %v236 = vsel %vm228, 0.0, %v234
    %v237 = vsel %vm229, 0.0, %v235
    %vm238 = vcmask 64512
    %v239 = vsel %vm238, %v232, -inf
    %240 = vmax.xlane.f32.xlu0 %v239
    %v241 = vpop.xlane.xlu0 %240
    %v242 = vsel %vm238, %v233, -inf
    %243 = vmax.xlane.f32.xlu0 %v242
    %v244 = vpop.xlane.xlu0 %243
    %v245 = vsel %vm238, %v236, -inf
    %246 = vmax.xlane.f32.xlu0 %v245
    %v247 = vpop.xlane.xlu0 %246
    %v248 = vsel %vm238, %v237, -inf
    %249 = vmax.xlane.f32.xlu0 %v248
    %v250 = vpop.xlane.xlu0 %249
    %v251 = vmax.f32 %v241, %v247
    %v252 = vmax.f32 %v244, %v250
    %v253 = vsub.f32 %v232, %v251
    %v254 = vsub.f32 %v233, %v252
    %v255 = vmul.f32 %v253, 1.442695
    %v256 = vpow.pop %v255
    %v257 = vmul.f32 %v254, 1.442695
    %v258 = vpow.pop %v257
    %v259 = vsel %vm238, %v256, 0.0
    %260 = vadd.xlane.f32.xlu0 %v259
    %v261 = vpop.xlane.xlu0 %260
    %v262 = vsel %vm238, %v258, 0.0
    %263 = vadd.xlane.f32.xlu0 %v262
    %v264 = vpop.xlane.xlu0 %263
    %v265 = vsub.f32 %v236, %v251
    %v266 = vsub.f32 %v237, %v252
    %v267 = vmul.f32 %v265, 1.442695
    %v268 = vpow.pop %v267
    %v269 = vmul.f32 %v266, 1.442695
    %v270 = vpow.pop %v269
    %v271 = vsel %vm238, %v268, 0.0
    %272 = vadd.xlane.f32.xlu0 %v271
    %v273 = vpop.xlane.xlu0 %272
    %v274 = vsel %vm238, %v270, 0.0
    %275 = vadd.xlane.f32.xlu0 %v274
    %v276 = vpop.xlane.xlu0 %275
    %v277 = vadd.f32 %v261, %v273
    %v278 = vadd.f32 %v264, %v276
    %v279 = vlog2.pop %v277
    %v280 = vmul.f32 %v279, 0.6931472
    %v281 = vlog2.pop %v278
    %v282 = vmul.f32 %v281, 0.6931472
    %v283 = vadd.f32 %v251, %v280
    %v284 = vadd.f32 %v252, %v282
    %v285 = vsub.f32 %v283, %v58
    %v286 = vsub.f32 %v284, %v58
    %v287 = vadd.f32 %v285, %v286
    %v288 = vld [vmem:[%s3] sm:$0xff]
    %v289 = vld [vmem:[%s4] sm:$0xf]
    %v290 = vunpack.c.l.bf16 %v289
    %v291 = vand.u32 2147483647, %v288
    %v292 = vsub.f32 0.0, %v291
    %v293 = vmul.f32 %v292, 1.442695
    %v294 = vpow.pop %v293
    %vm295 = vcmp.gt.f32.partialorder %v291, 20.0
    %v296 = vadd.f32 %v294, 1.0
    %v297 = vlog2.pop %v296
    %v298 = vmul.f32 %v297, 0.6931472
    %v299 = vsel %vm295, %v294, %v298
    %v300 = vmax.f32 %v288, 0.0
    %v301 = vmul.f32 %v288, %v290
    %v302 = vsub.f32 %v300, %v301
    %v303 = vadd.f32 %v302, %v299
    %vm304 = vcmp.lt.s32.totalorder %v213, 32
    %v305 = vsel %vm304, %v303, 0.0
    %306 = vadd.xlane.f32.xlu0 %v305
    %v307 = vpop.xlane.xlu0 %306
    %vm308 = vcmp.eq.s32.totalorder %v213, 0
    %vm309 = vcmp.eq.s32.totalorder %v213, 1
    %v310 = vsel %vm309, %v307, 0.0
    %v311 = vsel %vm308, %v287, %v310
    %312 = vst [vmem:[#allocation8] sm:$0xff] %v311
    // Predicated region
    $region30: #{tpu_custom_call.1} parent=1 // pred_check
      _
    $region31: #{tpu_custom_call.1} parent=1 // pred_check_branch
      %314 = sbr.rel (0) target = $region33
    $region32: #{tpu_custom_call.1} parent=1 // pred_region
      %s316 = ssub.s32 128, 128
      %317 = vsyncadd [#allocation5], %s316
      %s319 = sshll.u32 [#allocation8], 4
      %s320 = int_to_ptr.vmem [resolvable:$true] %s319
      %322 = dma.vmem_to_hbm [thread:$0]  %s320, 128, %s5, [#allocation5]
    $region33: #{tpu_custom_call.1} parent=1 // pred_fallthru
      _
    // Predicated region
    $region34: #{tpu_custom_call.1} parent=1 // pred_check
      _
    $region35: #{tpu_custom_call.1} parent=1 // pred_check_branch
      %324 = sbr.rel (0) target = $region37
    $region36: #{tpu_custom_call.1} parent=1 // pred_region
      %325 = dma.done [#allocation5], 128
    $region37: #{tpu_custom_call.1} parent=1 // pred_fallthru
      _
    %326 = vsyncpa [#allocation4], 1
    %327 = vsyncpa [#allocation7], 1
    %328 = vsyncpa [#allocation5], 1

// kernel: tpu_custom_call.1
$region0: #{tpu_custom_call.1}
  #allocation0 [shape = 'u32[]', space=smem, size = 0x4, offset = 0x4, fixed_abs, tag = 'smem constant byte address 0x4 - core index']
  #allocation1 [shape = 'u32[144,128]{1,0:T(1,128)}', space=vmem, size = 0x12000, scoped, tag = 'internal scratch']
  #allocation2 [shape = 'f32[1,1]{1,0:T(1,128)S(6)}', space=smem, size = 0x200, scoped, tag = 'scoped memory for tpu_custom_call.1']
  %s0 = inlined_call_operand.<no memory space> [shape: f32[1,1], index: 0, kind: input, shape index: {}]
  %s1 = inlined_call_operand.hbm [shape: f32[8,128], index: 1, kind: input, shape index: {}]
  %s2 = inlined_call_operand.hbm [shape: f32[8,128], index: 2, kind: input, shape index: {}]
  %s3 = inlined_call_operand.vmem [shape: f32[8,128], index: 3, kind: input, shape index: {}]
  %s4 = inlined_call_operand.vmem [shape: bf16[8,128], index: 4, kind: input, shape index: {}]
  %s5 = inlined_call_operand.hbm [shape: f32[8,128], index: 5, kind: output, shape index: {}]
  %s6 = sld [smem:[#allocation0]]
  $region38: #{tpu_custom_call.1} parent=0
    _
  %s8 = ssub.s32 1, %s6
  %s9 = scalar_select 0, %s8, %s6
  %10 = sst [smem:[#allocation2]] %s0
  $region1: #{tpu_custom_call.1} parent=0
    #allocation3 [shape = 'u8[4096]{0}', space=vmem, size = 0x1000, scoped, tag = 'input window, operand 1, single buffered']
    #allocation4 [shape = 's32[1]{0}', space=sflag, size = 0x4, scoped, tag = 'scoped memory for tpu_custom_call.1']
    #allocation5 [shape = 's32[1]{0}', space=sflag, size = 0x4, scoped, tag = 'scoped memory for tpu_custom_call.1']
    #allocation6 [shape = 'u8[4096]{0}', space=vmem, size = 0x1000, scoped, tag = 'input window, operand 2, single buffered']
    #allocation7 [shape = 's32[1]{0}', space=sflag, size = 0x4, scoped, tag = 'scoped memory for tpu_custom_call.1']
    #allocation8 [shape = 'u8[4096]{0}', space=vmem, size = 0x1000, scoped, tag = 'output window, operand 0, single buffered']
    %11 = vsyncpa [#allocation4], 0
    %12 = vsyncpa [#allocation7], 0
    %13 = vsyncpa [#allocation5], 0
    // Predicated region
    $region2: #{tpu_custom_call.1} parent=1 // pred_check
      _
    $region3: #{tpu_custom_call.1} parent=1 // pred_check_branch
      %15 = sbr.rel (0) target = $region5
    $region4: #{tpu_custom_call.1} parent=1 // pred_region
      _
    $region5: #{tpu_custom_call.1} parent=1 // pred_fallthru
      _
    // Predicated region
    $region6: #{tpu_custom_call.1} parent=1 // pred_check
      _
    $region7: #{tpu_custom_call.1} parent=1 // pred_check_branch
      %17 = sbr.rel (0) target = $region9
    $region8: #{tpu_custom_call.1} parent=1 // pred_region
      %s19 = ssub.s32 128, 128
      %20 = vsyncadd [#allocation4], %s19
      %s22 = sshll.u32 [#allocation3], 4
      %s23 = int_to_ptr.vmem [resolvable:$true] %s22
      %25 = dma.hbm_to_vmem [thread:$0]  %s1, 128, %s23, [#allocation4]
    $region9: #{tpu_custom_call.1} parent=1 // pred_fallthru
      _
    // Predicated region
    $region10: #{tpu_custom_call.1} parent=1 // pred_check
      _
    $region11: #{tpu_custom_call.1} parent=1 // pred_check_branch
      %27 = sbr.rel (0) target = $region13
    $region12: #{tpu_custom_call.1} parent=1 // pred_region
      %s29 = ssub.s32 128, 128
      %30 = vsyncadd [#allocation7], %s29
      %s32 = sshll.u32 [#allocation6], 4
      %s33 = int_to_ptr.vmem [resolvable:$true] %s32
      %35 = dma.hbm_to_vmem [thread:$0]  %s2, 128, %s33, [#allocation7]
    $region13: #{tpu_custom_call.1} parent=1 // pred_fallthru
      _
    // Predicated region
    $region14: #{tpu_custom_call.1} parent=1 // pred_check
      _
    $region15: #{tpu_custom_call.1} parent=1 // pred_check_branch
      %37 = sbr.rel (0) target = $region17
    $region16: #{tpu_custom_call.1} parent=1 // pred_region
      _
    $region17: #{tpu_custom_call.1} parent=1 // pred_fallthru
      _
    // Predicated region
    $region18: #{tpu_custom_call.1} parent=1 // pred_check
      _
    $region19: #{tpu_custom_call.1} parent=1 // pred_check_branch
      %39 = sbr.rel (0) target = $region21
    $region20: #{tpu_custom_call.1} parent=1 // pred_region
      _
    $region21: #{tpu_custom_call.1} parent=1 // pred_fallthru
      _
    // Predicated region
    $region22: #{tpu_custom_call.1} parent=1 // pred_check
      _
    $region23: #{tpu_custom_call.1} parent=1 // pred_check_branch
      %41 = sbr.rel (0) target = $region25
    $region24: #{tpu_custom_call.1} parent=1 // pred_region
      %42 = dma.done [#allocation4], 128
    $region25: #{tpu_custom_call.1} parent=1 // pred_fallthru
      _
    // Predicated region
    $region26: #{tpu_custom_call.1} parent=1 // pred_check
      _
    $region27: #{tpu_custom_call.1} parent=1 // pred_check_branch
      %44 = sbr.rel (0) target = $region29
    $region28: #{tpu_custom_call.1} parent=1 // pred_region
      %45 = dma.done [#allocation7], 128
    $region29: #{tpu_custom_call.1} parent=1 // pred_fallthru
      _
    %s46 = smul.u32 0, 8
    %s47 = sld [smem:[#allocation2]]
    %v48 = vld [vmem:[#allocation3] sm:$0xff]
    %v49 = vld [vmem:[#allocation6] sm:$0xff]
    %s50 = scalar_lea.vmem [#allocation3], %s46
    %v51 = vld [vmem:[%s50] sm:$0xff]
    %s52 = scalar_lea.vmem [#allocation6], %s46
    %v53 = vld [vmem:[%s52] sm:$0xff]
    %v54 = vmul.f32 %v51, %v53
    %55 = vadd.xlane.f32.xlu0 %v54
    %v56 = vpop.xlane.xlu0 %55
    %v57 = vstv %s47
    %v58 = vmul.f32 %v56, %v57
    %59 = vmatprep.subr.mxu0 0.0
    %60 = vmatpush1.xpose.msra.mxu0 %v48
    %61 = vmatprep.subr.mxu0 0.0
    %62 = vmatpush1.xpose.msra.mxu0 0.0
    %63 = vmatprep.subr.mxu0 0.0
    %64 = vmatpush1.xpose.msra.mxu0 0.0
    %65 = vmatprep.subr.mxu0 0.0
    %66 = vmatpush1.xpose.msra.mxu0 0.0
    %67 = vmatprep.subr.mxu0 0.0
    %68 = vmatpush1.xpose.msra.mxu0 0.0
    %69 = vmatprep.subr.mxu0 0.0
    %70 = vmatpush1.xpose.msra.mxu0 0.0
    %71 = vmatprep.subr.mxu0 0.0
    %72 = vmatpush1.xpose.msra.mxu0 0.0
    %73 = vmatprep.subr.mxu0 0.0
    %74 = vmatpush1.xpose.msra.mxu0 0.0
    %75 = vmatprep.subr.mxu0 0.0
    %76 = vmatpush1.xpose.msra.mxu0 0.0
    %77 = vmatprep.subr.mxu0 0.0
    %78 = vmatpush1.xpose.msra.mxu0 0.0
    %79 = vmatprep.subr.mxu0 0.0
    %80 = vmatpush1.xpose.msra.mxu0 0.0
    %81 = vmatprep.subr.mxu0 0.0
    %82 = vmatpush1.xpose.msra.mxu0 0.0
    %83 = vmatprep.subr.mxu0 0.0
    %84 = vmatpush1.xpose.msra.mxu0 0.0
    %85 = vmatprep.subr.mxu0 0.0
    %86 = vmatpush1.xpose.msra.mxu0 0.0
    %87 = vmatprep.subr.mxu0 0.0
    %88 = vmatpush1.xpose.msra.mxu0 0.0
    %89 = vmatprep.subr.mxu0 0.0
    %90 = vmatpush1.xpose.msra.mxu0 0.0
    %91 = vmatprep.subr.mxu0 0.0
    %92 = vmatpush1.xpose.msra.mxu0 0.0
    %93 = vmatprep.subr.mxu0 0.0
    %94 = vmatpush1.xpose.msra.mxu0 0.0
    %95 = vmatprep.subr.mxu0 0.0
    %96 = vmatpush1.xpose.msra.mxu0 0.0
    %97 = vmatprep.subr.mxu0 0.0
    %98 = vmatpush1.xpose.msra.mxu0 0.0
    %99 = vmatprep.subr.mxu0 0.0
    %100 = vmatpush1.xpose.msra.mxu0 0.0
    %101 = vmatprep.subr.mxu0 0.0
    %102 = vmatpush1.xpose.msra.mxu0 0.0
    %103 = vmatprep.subr.mxu0 0.0
    %104 = vmatpush1.xpose.msra.mxu0 0.0
    %105 = vmatprep.subr.mxu0 0.0
    %106 = vmatpush1.xpose.msra.mxu0 0.0
    %107 = vmatprep.subr.mxu0 0.0
    %108 = vmatpush1.xpose.msra.mxu0 0.0
    %109 = vmatprep.subr.mxu0 0.0
    %110 = vmatpush1.xpose.msra.mxu0 0.0
    %111 = vmatprep.subr.mxu0 0.0
    %112 = vmatpush1.xpose.msra.mxu0 0.0
    %113 = vmatprep.subr.mxu0 0.0
    %114 = vmatpush1.xpose.msra.mxu0 0.0
    %115 = vmatprep.subr.mxu0 0.0
    %116 = vmatpush1.xpose.msra.mxu0 0.0
    %117 = vmatprep.subr.mxu0 0.0
    %118 = vmatpush1.xpose.msra.mxu0 0.0
    %119 = vmatprep.subr.mxu0 0.0
    %120 = vmatpush1.xpose.msra.mxu0 0.0
    %121 = vmatprep.subr.mxu0 0.0
    %122 = vmatpush1.xpose.msra.mxu0 0.0
    %123 = vmatprep.mubr.f32.mxu0 0.0
    %124 = vmatmul.mubr.f32.gmra.mrb[0].mxu0 %v51
    %v125 = vpop.f32.mrb[0].mxu0
    %v126 = vadd.f32 0.0, %v125
    %v127 = vpop.f32.mrb[0].mxu0
    %128 = vmatprep.mubr.f32.mxu0 0.0
    %129 = vmatmul.mubr.f32.gmra.mrb[0].mxu0 %v53
    %v130 = vpop.f32.mrb[0].mxu0
    %v131 = vadd.f32 0.0, %v130
    %v132 = vpop.f32.mrb[0].mxu0
    %133 = vdwg.mxu0
    %134 = vmatprep.subr.mxu0 0.0
    %135 = vmatpush1.xpose.msra.mxu0 %v49
    %136 = vmatprep.subr.mxu0 0.0
    %137 = vmatpush1.xpose.msra.mxu0 0.0
    %138 = vmatprep.subr.mxu0 0.0
    %139 = vmatpush1.xpose.msra.mxu0 0.0
    %140 = vmatprep.subr.mxu0 0.0
    %141 = vmatpush1.xpose.msra.mxu0 0.0
    %142 = vmatprep.subr.mxu0 0.0
    %143 = vmatpush1.xpose.msra.mxu0 0.0
    %144 = vmatprep.subr.mxu0 0.0
    %145 = vmatpush1.xpose.msra.mxu0 0.0
    %146 = vmatprep.subr.mxu0 0.0
    %147 = vmatpush1.xpose.msra.mxu0 0.0
    %148 = vmatprep.subr.mxu0 0.0
    %149 = vmatpush1.xpose.msra.mxu0 0.0
    %150 = vmatprep.subr.mxu0 0.0
    %151 = vmatpush1.xpose.msra.mxu0 0.0
    %152 = vmatprep.subr.mxu0 0.0
    %153 = vmatpush1.xpose.msra.mxu0 0.0
    %154 = vmatprep.subr.mxu0 0.0
    %155 = vmatpush1.xpose.msra.mxu0 0.0
    %156 = vmatprep.subr.mxu0 0.0
    %157 = vmatpush1.xpose.msra.mxu0 0.0
    %158 = vmatprep.subr.mxu0 0.0
    %159 = vmatpush1.xpose.msra.mxu0 0.0
    %160 = vmatprep.subr.mxu0 0.0
    %161 = vmatpush1.xpose.msra.mxu0 0.0
    %162 = vmatprep.subr.mxu0 0.0
    %163 = vmatpush1.xpose.msra.mxu0 0.0
    %164 = vmatprep.subr.mxu0 0.0
    %165 = vmatpush1.xpose.msra.mxu0 0.0
    %166 = vmatprep.subr.mxu0 0.0
    %167 = vmatpush1.xpose.msra.mxu0 0.0
    %168 = vmatprep.subr.mxu0 0.0
    %169 = vmatpush1.xpose.msra.mxu0 0.0
    %170 = vmatprep.subr.mxu0 0.0
    %171 = vmatpush1.xpose.msra.mxu0 0.0
    %172 = vmatprep.subr.mxu0 0.0
    %173 = vmatpush1.xpose.msra.mxu0 0.0
    %174 = vmatprep.subr.mxu0 0.0
    %175 = vmatpush1.xpose.msra.mxu0 0.0
    %176 = vmatprep.subr.mxu0 0.0
    %177 = vmatpush1.xpose.msra.mxu0 0.0
    %178 = vmatprep.subr.mxu0 0.0
    %179 = vmatpush1.xpose.msra.mxu0 0.0
    %180 = vmatprep.subr.mxu0 0.0
    %181 = vmatpush1.xpose.msra.mxu0 0.0
    %182 = vmatprep.subr.mxu0 0.0
    %183 = vmatpush1.xpose.msra.mxu0 0.0
    %184 = vmatprep.subr.mxu0 0.0
    %185 = vmatpush1.xpose.msra.mxu0 0.0
    %186 = vmatprep.subr.mxu0 0.0
    %187 = vmatpush1.xpose.msra.mxu0 0.0
    %188 = vmatprep.subr.mxu0 0.0
    %189 = vmatpush1.xpose.msra.mxu0 0.0
    %190 = vmatprep.subr.mxu0 0.0
    %191 = vmatpush1.xpose.msra.mxu0 0.0
    %192 = vmatprep.subr.mxu0 0.0
    %193 = vmatpush1.xpose.msra.mxu0 0.0
    %194 = vmatprep.subr.mxu0 0.0
    %195 = vmatpush1.xpose.msra.mxu0 0.0
    %196 = vmatprep.subr.mxu0 0.0
    %197 = vmatpush1.xpose.msra.mxu0 0.0
    %198 = vmatprep.mubr.f32.mxu0 0.0
    %199 = vmatmul.mubr.f32.gmra.mrb[0].mxu0 %v51
    %v200 = vpop.f32.mrb[0].mxu0
    %v201 = vadd.f32 0.0, %v200
    %v202 = vpop.f32.mrb[0].mxu0
    %203 = vmatprep.mubr.f32.mxu0 0.0
    %204 = vmatmul.mubr.f32.gmra.mrb[0].mxu0 %v53
    %v205 = vpop.f32.mrb[0].mxu0
    %v206 = vadd.f32 0.0, %v205
    %v207 = vpop.f32.mrb[0].mxu0
    %208 = vdwg.mxu0
    %v209 = vlaneseq
    %v210 = vshrl.u32 %v209, 7
    %v211 = vadd.s32 %v210, 8
    %v212 = vlaneseq
    %v213 = vand.u32 %v212, 127
    %vm214 = vcmp.lt.s32.totalorder %v210, 8
    %vm215 = vcmp.lt.s32.totalorder %v211, 8
    %v216 = vstv %s46
    %v217 = vadd.s32 %v210, %v216
    %v218 = vadd.s32 %v211, %v216
    %vm219 = vcmp.eq.s32.totalorder %v213, %v217
    %vm220 = vcmp.eq.s32.totalorder %v213, %v218
    %vm221 = vmand %vm214, %vm219
    %vm222 = vmand %vm215, %vm220
    %vm223 = vcmp.ge.s32.totalorder %v210, 8
    %vm224 = vcmp.ge.s32.totalorder %v211, 8
    %v225 = vsub.s32 %v210, 8
    %v226 = vadd.s32 %v225, %v216
    %vm227 = vcmp.eq.s32.totalorder %v213, %v226
    %vm228 = vmand %vm223, %vm227
    %vm229 = vmand %vm224, %vm219
    %v230 = vmul.f32 %v126, %v57
    %v231 = vmul.f32 %v131, %v57
    %v232 = vsel %vm221, 0.0, %v230
    %v233 = vsel %vm222, 0.0, %v231
    %v234 = vmul.f32 %v201, %v57
    %v235 = vmul.f32 %v206, %v57
    %v236 = vsel %vm228, 0.0, %v234
    %v237 = vsel %vm229, 0.0, %v235
    %vm238 = vcmask 64512
    %v239 = vsel %vm238, %v232, -inf
    %240 = vmax.xlane.f32.xlu0 %v239
    %v241 = vpop.xlane.xlu0 %240
    %v242 = vsel %vm238, %v233, -inf
    %243 = vmax.xlane.f32.xlu0 %v242
    %v244 = vpop.xlane.xlu0 %243
    %v245 = vsel %vm238, %v236, -inf
    %246 = vmax.xlane.f32.xlu0 %v245
    %v247 = vpop.xlane.xlu0 %246
    %v248 = vsel %vm238, %v237, -inf
    %249 = vmax.xlane.f32.xlu0 %v248
    %v250 = vpop.xlane.xlu0 %249
    %v251 = vmax.f32 %v241, %v247
    %v252 = vmax.f32 %v244, %v250
    %v253 = vsub.f32 %v232, %v251
    %v254 = vsub.f32 %v233, %v252
    %v255 = vmul.f32 %v253, 1.442695
    %v256 = vpow.pop %v255
    %v257 = vmul.f32 %v254, 1.442695
    %v258 = vpow.pop %v257
    %v259 = vsel %vm238, %v256, 0.0
    %260 = vadd.xlane.f32.xlu0 %v259
    %v261 = vpop.xlane.xlu0 %260
    %v262 = vsel %vm238, %v258, 0.0
    %263 = vadd.xlane.f32.xlu0 %v262
    %v264 = vpop.xlane.xlu0 %263
    %v265 = vsub.f32 %v236, %v251
    %v266 = vsub.f32 %v237, %v252
    %v267 = vmul.f32 %v265, 1.442695
    %v268 = vpow.pop %v267
    %v269 = vmul.f32 %v266, 1.442695
    %v270 = vpow.pop %v269
    %v271 = vsel %vm238, %v268, 0.0
    %272 = vadd.xlane.f32.xlu0 %v271
    %v273 = vpop.xlane.xlu0 %272
    %v274 = vsel %vm238, %v270, 0.0
    %275 = vadd.xlane.f32.xlu0 %v274
    %v276 = vpop.xlane.xlu0 %275
    %v277 = vadd.f32 %v261, %v273
    %v278 = vadd.f32 %v264, %v276
    %v279 = vlog2.pop %v277
    %v280 = vmul.f32 %v279, 0.6931472
    %v281 = vlog2.pop %v278
    %v282 = vmul.f32 %v281, 0.6931472
    %v283 = vadd.f32 %v251, %v280
    %v284 = vadd.f32 %v252, %v282
    %v285 = vsub.f32 %v283, %v58
    %v286 = vsub.f32 %v284, %v58
    %v287 = vadd.f32 %v285, %v286
    %v288 = vld [vmem:[%s3] sm:$0xff]
    %v289 = vld [vmem:[%s4] sm:$0xf]
    %v290 = vunpack.c.l.bf16 %v289
    %v291 = vand.u32 2147483647, %v288
    %v292 = vsub.f32 0.0, %v291
    %v293 = vmul.f32 %v292, 1.442695
    %v294 = vpow.pop %v293
    %vm295 = vcmp.gt.f32.partialorder %v291, 20.0
    %v296 = vadd.f32 %v294, 1.0
    %v297 = vlog2.pop %v296
    %v298 = vmul.f32 %v297, 0.6931472
    %v299 = vsel %vm295, %v294, %v298
    %v300 = vmax.f32 %v288, 0.0
    %v301 = vmul.f32 %v288, %v290
    %v302 = vsub.f32 %v300, %v301
    %v303 = vadd.f32 %v302, %v299
    %vm304 = vcmp.lt.s32.totalorder %v213, 32
    %v305 = vsel %vm304, %v303, 0.0
    %306 = vadd.xlane.f32.xlu0 %v305
    %v307 = vpop.xlane.xlu0 %306
    %vm308 = vcmp.eq.s32.totalorder %v213, 0
    %vm309 = vcmp.eq.s32.totalorder %v213, 1
    %v310 = vsel %vm309, %v307, 0.0
    %v311 = vsel %vm308, %v287, %v310
    %312 = vst [vmem:[#allocation8] sm:$0xff] %v311
    // Predicated region
    $region30: #{tpu_custom_call.1} parent=1 // pred_check
      _
    $region31: #{tpu_custom_call.1} parent=1 // pred_check_branch
      %314 = sbr.rel (0) target = $region33
    $region32: #{tpu_custom_call.1} parent=1 // pred_region
      %s316 = ssub.s32 128, 128
      %317 = vsyncadd [#allocation5], %s316
      %s319 = sshll.u32 [#allocation8], 4
      %s320 = int_to_ptr.vmem [resolvable:$true] %s319
      %322 = dma.vmem_to_hbm [thread:$0]  %s320, 128, %s5, [#allocation5]
    $region33: #{tpu_custom_call.1} parent=1 // pred_fallthru
      _
    // Predicated region
    $region34: #{tpu_custom_call.1} parent=1 // pred_check
      _
    $region35: #{tpu_custom_call.1} parent=1 // pred_check_branch
      %324 = sbr.rel (0) target = $region37
    $region36: #{tpu_custom_call.1} parent=1 // pred_region
      %325 = dma.done [#allocation5], 128
    $region37: #{tpu_custom_call.1} parent=1 // pred_fallthru
      _
    %326 = vsyncpa [#allocation4], 1
    %327 = vsyncpa [#allocation7], 1
    %328 = vsyncpa [#allocation5], 1

</llo_original>
